<compile_context>
chip_gen: v7x
topology: tpu7x:2x2x1
jax: 0.10.0
libtpu: 0.0.40
codegen_flags: <defaults>
</compile_context>

<pallas_src>
import jax
import jax.numpy as jnp
import numpy as np
from jax import lax
from jax.experimental import pallas as pl
from jax.experimental.pallas import tpu as pltpu

LANE = 128


def _round_up(x, m):
    return (x + m - 1) // m * m


def _make_block_kernel(Bblk, L, K, d, p, c_in, c_pad, has_down):
    """Fused TemporalBlock kernel for one batch block of Bblk examples."""

    def kernel(*refs):
        if has_down:
            x_ref, w1_ref, b1_ref, w2_ref, b2_ref, wd_ref, bd_ref, out_ref = refs
        else:
            x_ref, w1_ref, b1_ref, w2_ref, b2_ref, out_ref = refs

        x = x_ref[...]                                       # (Bblk, L, C_in)
        M = Bblk * L

        # ---- conv1 (causal dilated, im2col -> one MXU matmul) + ReLU ----
        xpad = jnp.concatenate(
            [jnp.zeros((Bblk, p, c_in), jnp.float32), x], axis=1)
        cols1 = jnp.concatenate(
            [xpad[:, k * d:k * d + L, :] for k in range(K)], axis=-1)
        h1 = jnp.dot(cols1.reshape(M, K * c_in), w1_ref[...],
                     preferred_element_type=jnp.float32)
        h1 = jnp.maximum(h1 + b1_ref[...], 0.0)              # (M, c_pad)

        # ---- conv2 (causal dilated) + ReLU ----
        h1pad = jnp.concatenate(
            [jnp.zeros((Bblk, p, c_pad), jnp.float32),
             h1.reshape(Bblk, L, c_pad)], axis=1)
        cols2 = jnp.concatenate(
            [h1pad[:, k * d:k * d + L, :] for k in range(K)], axis=-1)
        h2 = jnp.dot(cols2.reshape(M, K * c_pad), w2_ref[...],
                     preferred_element_type=jnp.float32)
        h2 = jnp.maximum(h2 + b2_ref[...], 0.0)              # (M, c_pad)

        # ---- residual (optional 1x1 downsample) + final ReLU ----
        x_flat = x.reshape(M, c_in)
        if has_down:
            res = jnp.dot(x_flat, wd_ref[...],
                          preferred_element_type=jnp.float32) + bd_ref[...]
        elif c_pad > c_in:
            res = jnp.concatenate(
                [x_flat, jnp.zeros((M, c_pad - c_in), jnp.float32)], axis=-1)
        else:
            res = x_flat
        out_ref[...] = jnp.maximum(h2 + res, 0.0).reshape(Bblk, L, c_pad)

    return kernel


def temporal_block(x_ncl, w1, b1, w2, b2, wd=None, bd=None, *,
                   kernel_size, dilation, batch_block=8):
    """TemporalBlock forward. x_ncl: (B, C_in, L) float -> (B, C_out, L)."""
    B, C_in, L = x_ncl.shape
    C_out = w1.shape[0]
    K, d = kernel_size, dilation
    p = (K - 1) * d
    has_down = wd is not None

    # lane-dense padded channel count for output / intermediate tensors
    C_pad = _round_up(C_out, LANE)

    # batch blocking (pad B up to a multiple of the block if needed)
    Bblk = min(batch_block, B)
    Bp = _round_up(B, Bblk)
    x = jnp.transpose(x_ncl, (0, 2, 1)).astype(jnp.float32)       # (B, L, C_in)
    if Bp != B:
        x = jnp.pad(x, ((0, Bp - B), (0, 0), (0, 0)))

    def pad_out(w):  # zero-pad the output-channel (last) axis to C_pad
        return jnp.pad(w, ((0, 0),) * (w.ndim - 1) + ((0, C_pad - C_out),))

    # conv weights: (C_out, C_in, K) -> (K, C_in, C_out) -> (K*C_in, C_pad)
    w1_t = pad_out(jnp.transpose(w1, (2, 1, 0)).reshape(K * C_in, C_out))
    w2_t = jnp.transpose(w2, (2, 1, 0))                            # (K, C_out, C_out)
    w2_t = jnp.pad(w2_t, ((0, 0), (0, C_pad - C_out), (0, C_pad - C_out)))
    w2_t = w2_t.reshape(K * C_pad, C_pad)
    b1_p = pad_out(b1.reshape(1, C_out))
    b2_p = pad_out(b2.reshape(1, C_out))

    args = [x, w1_t, b1_p, w2_t, b2_p]
    in_specs = [
        pl.BlockSpec((Bblk, L, C_in), lambda b: (b, 0, 0)),
        pl.BlockSpec((K * C_in, C_pad), lambda b: (0, 0)),
        pl.BlockSpec((1, C_pad), lambda b: (0, 0)),
        pl.BlockSpec((K * C_pad, C_pad), lambda b: (0, 0)),
        pl.BlockSpec((1, C_pad), lambda b: (0, 0)),
    ]
    if has_down:
        wd_t = pad_out(jnp.transpose(wd[:, :, 0], (1, 0)))         # (C_in, C_pad)
        bd_p = pad_out(bd.reshape(1, C_out))
        args += [wd_t, bd_p]
        in_specs += [pl.BlockSpec((C_in, C_pad), lambda b: (0, 0)),
                     pl.BlockSpec((1, C_pad), lambda b: (0, 0))]

    kernel = _make_block_kernel(Bblk, L, K, d, p, C_in, C_pad, has_down)
    out = pl.pallas_call(
        kernel,
        out_shape=jax.ShapeDtypeStruct((Bp, L, C_pad), jnp.float32),
        grid_spec=pltpu.PrefetchScalarGridSpec(
            num_scalar_prefetch=0,
            grid=(Bp // Bblk,),
            in_specs=in_specs,
            out_specs=pl.BlockSpec((Bblk, L, C_pad), lambda b: (b, 0, 0)),
        ),
        compiler_params=pltpu.CompilerParams(
            dimension_semantics=("parallel",)),
    )(*args)

    # strip batch/lane padding and return in PyTorch NCL layout
    return jnp.transpose(out[:B, :, :C_out], (0, 2, 1))


# ------------------------ pure-JAX reference (NCL) --------------------------
def _conv1d_ref(x, w, b, dilation, padding):
    out = lax.conv_general_dilated(
        x, w, window_strides=(1,), padding=[(padding, padding)],
        rhs_dilation=(dilation,), dimension_numbers=("NCH", "OIH", "NCH"))
    return out + b[None, :, None]


def temporal_block_ref(x, w1, b1, w2, b2, wd, bd, K, d):
    p = (K - 1) * d
    L = x.shape[2]
    h = jnp.maximum(_conv1d_ref(x, w1, b1, d, p)[:, :, :L], 0.0)   # conv1+chomp+relu
    h = jnp.maximum(_conv1d_ref(h, w2, b2, d, p)[:, :, :L], 0.0)   # conv2+chomp+relu
    res = _conv1d_ref(x, wd, bd, 1, 0) if wd is not None else x
    return jnp.maximum(h + res, 0.0)


if __name__ == "__main__":
    key = jax.random.PRNGKey(0)
    B, C_in, C_out, L = 8, 4, 16, 16
    K, d = 3, 2                       # padding = (K-1)*d, stride = 1

    ks = jax.random.split(key, 8)
    x = jax.random.normal(ks[0], (B, C_in, L), jnp.float32)
    w1 = 0.01 * jax.random.normal(ks[1], (C_out, C_in, K), jnp.float32)
    b1 = 0.05 * jax.random.normal(ks[2], (C_out,), jnp.float32)
    w2 = 0.01 * jax.random.normal(ks[3], (C_out, C_out, K), jnp.float32)
    b2 = 0.05 * jax.random.normal(ks[4], (C_out,), jnp.float32)
    wd = 0.01 * jax.random.normal(ks[5], (C_out, C_in, 1), jnp.float32)  # downsample
    bd = 0.05 * jax.random.normal(ks[6], (C_out,), jnp.float32)

    # block with downsample (C_in != C_out)
    out = temporal_block(x, w1, b1, w2, b2, wd, bd,
                         kernel_size=K, dilation=d, batch_block=4)
    out = jax.block_until_ready(out)
    ref = temporal_block_ref(x, w1, b1, w2, b2, wd, bd, K, d)
    assert out.shape == (B, C_out, L)
    np.testing.assert_allclose(np.asarray(out), np.asarray(ref),
                               rtol=1e-4, atol=1e-5)

    # block without downsample (C_in == C_out, identity residual)
    x2 = jax.random.normal(ks[7], (B, C_out, L), jnp.float32)
    out2 = temporal_block(x2, w2, b2, w2, b2, None, None,
                          kernel_size=K, dilation=d, batch_block=4)
    out2 = jax.block_until_ready(out2)
    ref2 = temporal_block_ref(x2, w2, b2, w2, b2, None, None, K, d)
    np.testing.assert_allclose(np.asarray(out2), np.asarray(ref2),
                               rtol=1e-4, atol=1e-5)

    print("KERNEL_OK")
</pallas_src>

<mosaic_0001>
module attributes {stable_mosaic.version = 11 : i64} {
  func.func @kernel(%arg0: i32, %arg1: memref<4x16x4xf32, #tpu.memory_space<vmem>>, %arg2: memref<12x128xf32, #tpu.memory_space<vmem>>, %arg3: memref<1x128xf32, #tpu.memory_space<vmem>>, %arg4: memref<384x128xf32, #tpu.memory_space<vmem>>, %arg5: memref<1x128xf32, #tpu.memory_space<vmem>>, %arg6: memref<4x128xf32, #tpu.memory_space<vmem>>, %arg7: memref<1x128xf32, #tpu.memory_space<vmem>>, %arg8: memref<4x16x128xf32, #tpu.memory_space<vmem>>) attributes {dimension_semantics = [#tpu.dimension_semantics<parallel>], iteration_bounds = array<i64: 2>, scalar_prefetch = 0 : i64, scratch_operands = 0 : i64, tpu.core_type = #tpu.core_type<tc>, window_params = [{transform_indices = @transform_0, window_bounds = array<i64: 4, 16, 4>}, {pipeline_mode = #tpu.pipeline_mode<synchronous>, transform_indices = @transform_1, window_bounds = array<i64: 12, 128>}, {pipeline_mode = #tpu.pipeline_mode<synchronous>, transform_indices = @transform_2, window_bounds = array<i64: 1, 128>}, {pipeline_mode = #tpu.pipeline_mode<synchronous>, transform_indices = @transform_3, window_bounds = array<i64: 384, 128>}, {pipeline_mode = #tpu.pipeline_mode<synchronous>, transform_indices = @transform_4, window_bounds = array<i64: 1, 128>}, {pipeline_mode = #tpu.pipeline_mode<synchronous>, transform_indices = @transform_5, window_bounds = array<i64: 4, 128>}, {pipeline_mode = #tpu.pipeline_mode<synchronous>, transform_indices = @transform_6, window_bounds = array<i64: 1, 128>}, {transform_indices = @transform_7, window_bounds = array<i64: 4, 16, 128>}]} {
    %c0 = arith.constant 0 : index
    %c0_0 = arith.constant 0 : index
    %c0_1 = arith.constant 0 : index
    %0 = vector.load %arg1[%c0, %c0_0, %c0_1] : memref<4x16x4xf32, #tpu.memory_space<vmem>>, vector<4x16x4xf32>
    %cst = arith.constant 0.000000e+00 : f32
    %1 = vector.broadcast %cst : f32 to vector<4x4x4xf32>
    %2 = tpu.concatenate %1, %0 in 1 : vector<4x4x4xf32>, vector<4x16x4xf32> -> vector<4x20x4xf32>
    %3 = vector.extract_strided_slice %2 {offsets = [0, 0, 0], sizes = [4, 16, 4], strides = [1, 1, 1]} : vector<4x20x4xf32> to vector<4x16x4xf32>
    %4 = vector.extract_strided_slice %2 {offsets = [0, 2, 0], sizes = [4, 16, 4], strides = [1, 1, 1]} : vector<4x20x4xf32> to vector<4x16x4xf32>
    %5 = vector.extract_strided_slice %2 {offsets = [0, 4, 0], sizes = [4, 16, 4], strides = [1, 1, 1]} : vector<4x20x4xf32> to vector<4x16x4xf32>
    %6 = tpu.concatenate %3, %4, %5 in 2 : vector<4x16x4xf32>, vector<4x16x4xf32>, vector<4x16x4xf32> -> vector<4x16x12xf32>
    %7 = vector.shape_cast %6 : vector<4x16x12xf32> to vector<64x12xf32>
    %c0_2 = arith.constant 0 : index
    %c0_3 = arith.constant 0 : index
    %8 = vector.load %arg2[%c0_2, %c0_3] : memref<12x128xf32, #tpu.memory_space<vmem>>, vector<12x128xf32>
    %cst_4 = arith.constant dense<0.000000e+00> : vector<64x128xf32>
    %9 = tpu.matmul %7, %8, %cst_4 {dimension_numbers = #tpu.dot_dimension_numbers<[1], [0], [0], [1], [0, 0, 1, 1], [], []>} : vector<64x12xf32>, vector<12x128xf32>, vector<64x128xf32> -> vector<64x128xf32>
    %c0_5 = arith.constant 0 : index
    %c0_6 = arith.constant 0 : index
    %10 = vector.load %arg3[%c0_5, %c0_6] : memref<1x128xf32, #tpu.memory_space<vmem>>, vector<1x128xf32>
    %11 = vector.broadcast %10 : vector<1x128xf32> to vector<64x128xf32>
    %12 = arith.addf %9, %11 : vector<64x128xf32>
    %cst_7 = arith.constant 0.000000e+00 : f32
    %13 = vector.broadcast %cst_7 : f32 to vector<64x128xf32>
    %14 = arith.maximumf %12, %13 : vector<64x128xf32>
    %cst_8 = arith.constant 0.000000e+00 : f32
    %15 = vector.broadcast %cst_8 : f32 to vector<4x4x128xf32>
    %16 = vector.shape_cast %14 : vector<64x128xf32> to vector<4x16x128xf32>
    %17 = tpu.concatenate %15, %16 in 1 : vector<4x4x128xf32>, vector<4x16x128xf32> -> vector<4x20x128xf32>
    %18 = vector.extract_strided_slice %17 {offsets = [0, 0, 0], sizes = [4, 16, 128], strides = [1, 1, 1]} : vector<4x20x128xf32> to vector<4x16x128xf32>
    %19 = vector.extract_strided_slice %17 {offsets = [0, 2, 0], sizes = [4, 16, 128], strides = [1, 1, 1]} : vector<4x20x128xf32> to vector<4x16x128xf32>
    %20 = vector.extract_strided_slice %17 {offsets = [0, 4, 0], sizes = [4, 16, 128], strides = [1, 1, 1]} : vector<4x20x128xf32> to vector<4x16x128xf32>
    %21 = tpu.concatenate %18, %19, %20 in 2 : vector<4x16x128xf32>, vector<4x16x128xf32>, vector<4x16x128xf32> -> vector<4x16x384xf32>
    %22 = vector.shape_cast %21 : vector<4x16x384xf32> to vector<64x384xf32>
    %c0_9 = arith.constant 0 : index
    %c0_10 = arith.constant 0 : index
    %23 = vector.load %arg4[%c0_9, %c0_10] : memref<384x128xf32, #tpu.memory_space<vmem>>, vector<384x128xf32>
    %cst_11 = arith.constant dense<0.000000e+00> : vector<64x128xf32>
    %24 = tpu.matmul %22, %23, %cst_11 {dimension_numbers = #tpu.dot_dimension_numbers<[1], [0], [0], [1], [0, 0, 1, 1], [], []>} : vector<64x384xf32>, vector<384x128xf32>, vector<64x128xf32> -> vector<64x128xf32>
    %c0_12 = arith.constant 0 : index
    %c0_13 = arith.constant 0 : index
    %25 = vector.load %arg5[%c0_12, %c0_13] : memref<1x128xf32, #tpu.memory_space<vmem>>, vector<1x128xf32>
    %26 = vector.broadcast %25 : vector<1x128xf32> to vector<64x128xf32>
    %27 = arith.addf %24, %26 : vector<64x128xf32>
    %cst_14 = arith.constant 0.000000e+00 : f32
    %28 = vector.broadcast %cst_14 : f32 to vector<64x128xf32>
    %29 = arith.maximumf %27, %28 : vector<64x128xf32>
    %30 = vector.shape_cast %0 : vector<4x16x4xf32> to vector<64x4xf32>
    %c0_15 = arith.constant 0 : index
    %c0_16 = arith.constant 0 : index
    %31 = vector.load %arg6[%c0_15, %c0_16] : memref<4x128xf32, #tpu.memory_space<vmem>>, vector<4x128xf32>
    %cst_17 = arith.constant dense<0.000000e+00> : vector<64x128xf32>
    %32 = tpu.matmul %30, %31, %cst_17 {dimension_numbers = #tpu.dot_dimension_numbers<[1], [0], [0], [1], [0, 0, 1, 1], [], []>} : vector<64x4xf32>, vector<4x128xf32>, vector<64x128xf32> -> vector<64x128xf32>
    %c0_18 = arith.constant 0 : index
    %c0_19 = arith.constant 0 : index
    %33 = vector.load %arg7[%c0_18, %c0_19] : memref<1x128xf32, #tpu.memory_space<vmem>>, vector<1x128xf32>
    %34 = vector.broadcast %33 : vector<1x128xf32> to vector<64x128xf32>
    %35 = arith.addf %32, %34 : vector<64x128xf32>
    %36 = arith.addf %29, %35 : vector<64x128xf32>
    %cst_20 = arith.constant 0.000000e+00 : f32
    %37 = vector.broadcast %cst_20 : f32 to vector<64x128xf32>
    %38 = arith.maximumf %36, %37 : vector<64x128xf32>
    %39 = vector.shape_cast %38 : vector<64x128xf32> to vector<4x16x128xf32>
    %c0_21 = arith.constant 0 : index
    %c0_22 = arith.constant 0 : index
    %c0_23 = arith.constant 0 : index
    %40 = vector.load %arg8[%c0_21, %c0_22, %c0_23] : memref<4x16x128xf32, #tpu.memory_space<vmem>>, vector<4x16x128xf32>
    tpu.vector_store %arg8[%c0_21, %c0_22, %c0_23], %39 {strides = array<i32>} : memref<4x16x128xf32, #tpu.memory_space<vmem>>, vector<4x16x128xf32>,
    return
  }
  func.func @transform_0(%arg0: i32) -> (i32, i32, i32) {
    %c0_i32 = arith.constant 0 : i32
    %c0_i32_0 = arith.constant 0 : i32
    %c0_i32_1 = arith.constant 0 : i32
    return %arg0, %c0_i32, %c0_i32_0 : i32, i32, i32
  }
  func.func @transform_1(%arg0: i32) -> (i32, i32) {
    %c0_i32 = arith.constant 0 : i32
    %c0_i32_0 = arith.constant 0 : i32
    %c0_i32_1 = arith.constant 0 : i32
    return %c0_i32, %c0_i32_0 : i32, i32
  }
  func.func @transform_2(%arg0: i32) -> (i32, i32) {
    %c0_i32 = arith.constant 0 : i32
    %c0_i32_0 = arith.constant 0 : i32
    %c0_i32_1 = arith.constant 0 : i32
    return %c0_i32, %c0_i32_0 : i32, i32
  }
  func.func @transform_3(%arg0: i32) -> (i32, i32) {
    %c0_i32 = arith.constant 0 : i32
    %c0_i32_0 = arith.constant 0 : i32
    %c0_i32_1 = arith.constant 0 : i32
    return %c0_i32, %c0_i32_0 : i32, i32
  }
  func.func @transform_4(%arg0: i32) -> (i32, i32) {
    %c0_i32 = arith.constant 0 : i32
    %c0_i32_0 = arith.constant 0 : i32
    %c0_i32_1 = arith.constant 0 : i32
    return %c0_i32, %c0_i32_0 : i32, i32
  }
  func.func @transform_5(%arg0: i32) -> (i32, i32) {
    %c0_i32 = arith.constant 0 : i32
    %c0_i32_0 = arith.constant 0 : i32
    %c0_i32_1 = arith.constant 0 : i32
    return %c0_i32, %c0_i32_0 : i32, i32
  }
  func.func @transform_6(%arg0: i32) -> (i32, i32) {
    %c0_i32 = arith.constant 0 : i32
    %c0_i32_0 = arith.constant 0 : i32
    %c0_i32_1 = arith.constant 0 : i32
    return %c0_i32, %c0_i32_0 : i32, i32
  }
  func.func @transform_7(%arg0: i32) -> (i32, i32, i32) {
    %c0_i32 = arith.constant 0 : i32
    %c0_i32_0 = arith.constant 0 : i32
    %c0_i32_1 = arith.constant 0 : i32
    return %arg0, %c0_i32, %c0_i32_0 : i32, i32, i32
  }
}

</mosaic_0001>

<llo_original>
// kernel: tpu_custom_call.1
$region0: #{tpu_custom_call.1}
  #allocation0 [shape = 'u32[]', space=smem, size = 0x4, offset = 0x4, fixed_abs, tag = 'smem constant byte address 0x4 - core index']
  #allocation1 [shape = 'u32[144,128]{1,0:T(1,128)}', space=vmem, size = 0x12000, scoped, tag = 'internal scratch']
  %s0 = inlined_call_operand.vmem [shape: f32[8,16,4], index: 0, kind: input, shape index: {}]
  %s1 = inlined_call_operand.vmem [shape: f32[12,128], index: 1, kind: input, shape index: {}]
  %s2 = inlined_call_operand.vmem [shape: f32[1,128], index: 2, kind: input, shape index: {}]
  %s3 = inlined_call_operand.hbm [shape: f32[384,128], index: 3, kind: input, shape index: {}]
  %s4 = inlined_call_operand.vmem [shape: f32[1,128], index: 4, kind: input, shape index: {}]
  %s5 = inlined_call_operand.vmem [shape: f32[4,128], index: 5, kind: input, shape index: {}]
  %s6 = inlined_call_operand.vmem [shape: f32[1,128], index: 6, kind: input, shape index: {}]
  %s7 = inlined_call_operand.hbm [shape: f32[8,16,128], index: 7, kind: output, shape index: {}]
  %s8 = sld [smem:[#allocation0]]
  $region65: #{tpu_custom_call.1} parent=0
    _
  %s10 = ssub.s32 1, %s8
  %s11 = scalar_select 0, %s10, %s8
  $region1: #{tpu_custom_call.1} parent=0
    #allocation2 [shape = 'u8[196608]{0}', space=vmem, size = 0x30000, scoped, tag = 'input window, operand 3, single buffered']
    #allocation3 [shape = 's32[2]{0}', space=sflag, size = 0x8, scoped, tag = 'scoped memory for tpu_custom_call.1']
    #allocation4 [shape = 's32[2]{0}', space=sflag, size = 0x8, scoped, tag = 'scoped memory for tpu_custom_call.1']
    #allocation5 [shape = 'u8[65536]{0}', space=vmem, size = 0x10000, scoped, tag = 'output window, operand 0']
    %12 = vsyncpa [#allocation3], 0
    %13 = vsyncpa [#allocation4], 0
    %s14 = scalar_lea.sflag [#allocation4], 1
    %15 = vsyncpa %s14, 0
    loop: start=0, step=1, limit=4
    $region2: #{tpu_custom_call.1} parent=1 // loop_pre_header
      _
    $region3: #{tpu_custom_call.1} parent=1 // loop_header
      %s17 = sphi 0, %s21
      %p18 = scmp.ge.s32.totalorder %s17, 4
      %s27 = sphi 0, %s29
      %s30 = sphi 0, %s27
      %s31 = sphi 0, %s30
      %s47 = sphi 0, %s31
      %s51 = sphi 0, %s51
      %s53 = sphi 0, %s51
      %s54 = sphi 0, %s53
      %s68 = sphi 0, %s54
      %s72 = sphi 0, %s72
      %s74 = sphi 0, %s72
      %s75 = sphi 0, %s74
      %s89 = sphi 0, %s75
      %s93 = sphi 0, %s93
      %s95 = sphi 0, %s93
      %s96 = sphi 0, %s95
      %s110 = sphi 0, %s96
      %s114 = sphi 0, %s114
      %s116 = sphi 0, %s114
      %s117 = sphi 0, %s116
      %s131 = sphi 0, %s117
      %s135 = sphi 0, %s135
      %s137 = sphi 0, %s135
      %s138 = sphi 0, %s137
      %s152 = sphi 0, %s138
      %s156 = sphi 0, %s156
      %s158 = sphi 0, %s156
      %s159 = sphi 0, %s158
      %s173 = sphi 0, %s159
      %s179 = sphi 0, %s181
      %s182 = sphi 0, %s179
      %s183 = sphi 0, %s182
      %s199 = sphi 0, %s183
    $region4: #{tpu_custom_call.1} parent=1 // loop_header_branch
      %20 = sbr.rel (%p18) target = $region8
    $region5: #{tpu_custom_call.1} parent=1 // loop_body
      %s22 = ssub.s32 %s17, 1
      %s23 = ssub.s32 %s17, 2
      %s24 = sadd.s32 %s17, 1
      %s25 = ssub.s32 %s17, %s24
      %p26 = scmp.eq.s32.totalorder %s25, 0
      %s28 = sadd.s32 %s27, 1
      %s29 = scalar_select %p26, %s27, %s28
      %p32 = pneg %p26
      %p33 = scmp.eq.s32.totalorder %s17, 1
      %p34 = por %p32, %p33
      %p35 = scmp.ne.s32.totalorder %s27, %s30
      %p36 = scmp.eq.s32.totalorder %s17, 0
      %p37 = por %p35, %p36
      %p38 = scmp.ne.s32.totalorder %s27, %s30
      %p39 = scmp.eq.s32.totalorder %s22, 1
      %p40 = por %p38, %p39
      %p41 = scmp.ne.s32.totalorder %s30, %s31
      %p42 = scmp.eq.s32.totalorder %s22, 0
      %p43 = por %p41, %p42
      %p44 = scmp.ne.s32.totalorder %s30, %s31
      %p45 = scmp.eq.s32.totalorder %s23, 1
      %p46 = por %p44, %p45
      %p48 = scmp.ne.s32.totalorder %s31, %s47
      %p49 = scmp.eq.s32.totalorder %s23, 0
      %p50 = por %p48, %p49
      %s52 = sadd.s32 %s51, 1
      %p55 = scmp.eq.s32.totalorder %s17, 1
      %p56 = scmp.ne.s32.totalorder %s51, %s53
      %p57 = scmp.eq.s32.totalorder %s17, 0
      %p58 = por %p56, %p57
      %p59 = scmp.ne.s32.totalorder %s51, %s53
      %p60 = scmp.eq.s32.totalorder %s22, 1
      %p61 = por %p59, %p60
      %p62 = scmp.ne.s32.totalorder %s53, %s54
      %p63 = scmp.eq.s32.totalorder %s22, 0
      %p64 = por %p62, %p63
      %p65 = scmp.ne.s32.totalorder %s53, %s54
      %p66 = scmp.eq.s32.totalorder %s23, 1
      %p67 = por %p65, %p66
      %p69 = scmp.ne.s32.totalorder %s54, %s68
      %p70 = scmp.eq.s32.totalorder %s23, 0
      %p71 = por %p69, %p70
      %s73 = sadd.s32 %s72, 1
      %p76 = scmp.eq.s32.totalorder %s17, 1
      %p77 = scmp.ne.s32.totalorder %s72, %s74
      %p78 = scmp.eq.s32.totalorder %s17, 0
      %p79 = por %p77, %p78
      %p80 = scmp.ne.s32.totalorder %s72, %s74
      %p81 = scmp.eq.s32.totalorder %s22, 1
      %p82 = por %p80, %p81
      %p83 = scmp.ne.s32.totalorder %s74, %s75
      %p84 = scmp.eq.s32.totalorder %s22, 0
      %p85 = por %p83, %p84
      %p86 = scmp.ne.s32.totalorder %s74, %s75
      %p87 = scmp.eq.s32.totalorder %s23, 1
      %p88 = por %p86, %p87
      %p90 = scmp.ne.s32.totalorder %s75, %s89
      %p91 = scmp.eq.s32.totalorder %s23, 0
      %p92 = por %p90, %p91
      %s94 = sadd.s32 %s93, 1
      %p97 = scmp.eq.s32.totalorder %s17, 1
      %p98 = scmp.ne.s32.totalorder %s93, %s95
      %p99 = scmp.eq.s32.totalorder %s17, 0
      %p100 = por %p98, %p99
      %p101 = scmp.ne.s32.totalorder %s93, %s95
      %p102 = scmp.eq.s32.totalorder %s22, 1
      %p103 = por %p101, %p102
      %p104 = scmp.ne.s32.totalorder %s95, %s96
      %p105 = scmp.eq.s32.totalorder %s22, 0
      %p106 = por %p104, %p105
      %p107 = scmp.ne.s32.totalorder %s95, %s96
      %p108 = scmp.eq.s32.totalorder %s23, 1
      %p109 = por %p107, %p108
      %p111 = scmp.ne.s32.totalorder %s96, %s110
      %p112 = scmp.eq.s32.totalorder %s23, 0
      %p113 = por %p111, %p112
      %s115 = sadd.s32 %s114, 1
      %p118 = scmp.eq.s32.totalorder %s17, 1
      %p119 = scmp.ne.s32.totalorder %s114, %s116
      %p120 = scmp.eq.s32.totalorder %s17, 0
      %p121 = por %p119, %p120
      %p122 = scmp.ne.s32.totalorder %s114, %s116
      %p123 = scmp.eq.s32.totalorder %s22, 1
      %p124 = por %p122, %p123
      %p125 = scmp.ne.s32.totalorder %s116, %s117
      %p126 = scmp.eq.s32.totalorder %s22, 0
      %p127 = por %p125, %p126
      %p128 = scmp.ne.s32.totalorder %s116, %s117
      %p129 = scmp.eq.s32.totalorder %s23, 1
      %p130 = por %p128, %p129
      %p132 = scmp.ne.s32.totalorder %s117, %s131
      %p133 = scmp.eq.s32.totalorder %s23, 0
      %p134 = por %p132, %p133
      %s136 = sadd.s32 %s135, 1
      %p139 = scmp.eq.s32.totalorder %s17, 1
      %p140 = scmp.ne.s32.totalorder %s135, %s137
      %p141 = scmp.eq.s32.totalorder %s17, 0
      %p142 = por %p140, %p141
      %p143 = scmp.ne.s32.totalorder %s135, %s137
      %p144 = scmp.eq.s32.totalorder %s22, 1
      %p145 = por %p143, %p144
      %p146 = scmp.ne.s32.totalorder %s137, %s138
      %p147 = scmp.eq.s32.totalorder %s22, 0
      %p148 = por %p146, %p147
      %p149 = scmp.ne.s32.totalorder %s137, %s138
      %p150 = scmp.eq.s32.totalorder %s23, 1
      %p151 = por %p149, %p150
      %p153 = scmp.ne.s32.totalorder %s138, %s152
      %p154 = scmp.eq.s32.totalorder %s23, 0
      %p155 = por %p153, %p154
      %s157 = sadd.s32 %s156, 1
      %p160 = scmp.eq.s32.totalorder %s17, 1
      %p161 = scmp.ne.s32.totalorder %s156, %s158
      %p162 = scmp.eq.s32.totalorder %s17, 0
      %p163 = por %p161, %p162
      %p164 = scmp.ne.s32.totalorder %s156, %s158
      %p165 = scmp.eq.s32.totalorder %s22, 1
      %p166 = por %p164, %p165
      %p167 = scmp.ne.s32.totalorder %s158, %s159
      %p168 = scmp.eq.s32.totalorder %s22, 0
      %p169 = por %p167, %p168
      %p170 = scmp.ne.s32.totalorder %s158, %s159
      %p171 = scmp.eq.s32.totalorder %s23, 1
      %p172 = por %p170, %p171
      %p174 = scmp.ne.s32.totalorder %s159, %s173
      %p175 = scmp.eq.s32.totalorder %s23, 0
      %p176 = por %p174, %p175
      %s177 = ssub.s32 %s17, %s24
      %p178 = scmp.eq.s32.totalorder %s177, 0
      %s180 = sadd.s32 %s179, 1
      %s181 = scalar_select %p178, %s179, %s180
      %p184 = pneg %p178
      %p185 = scmp.eq.s32.totalorder %s17, 1
      %p186 = por %p184, %p185
      %p187 = scmp.ne.s32.totalorder %s179, %s182
      %p188 = scmp.eq.s32.totalorder %s17, 0
      %p189 = por %p187, %p188
      %p190 = scmp.ne.s32.totalorder %s179, %s182
      %p191 = scmp.eq.s32.totalorder %s22, 1
      %p192 = por %p190, %p191
      %p193 = scmp.ne.s32.totalorder %s182, %s183
      %p194 = scmp.eq.s32.totalorder %s22, 0
      %p195 = por %p193, %p194
      %p196 = scmp.ne.s32.totalorder %s182, %s183
      %p197 = scmp.eq.s32.totalorder %s23, 1
      %p198 = por %p196, %p197
      %p200 = scmp.ne.s32.totalorder %s183, %s199
      %p201 = scmp.eq.s32.totalorder %s23, 0
      %p202 = por %p200, %p201
      %p203 = scmp.le.s32.totalorder 1, %s17
      %p204 = scmp.lt.s32.totalorder %s17, 3
      %p205 = pnand %p203, %p204
      %p206 = pneg %p205
      // Predicated region
      $region9: #{tpu_custom_call.1} parent=5 // pred_check
        _
      $region10: #{tpu_custom_call.1} parent=5 // pred_check_branch
        %208 = sbr.rel (%p205) target = $region12
      $region11: #{tpu_custom_call.1} parent=5 // pred_region
        %s209 = ssub.s32 %s17, 1
        // Predicated region
        $region13: #{tpu_custom_call.1} parent=11 // pred_check
          %p210 = pneg %p64
        $region14: #{tpu_custom_call.1} parent=11 // pred_check_branch
          %212 = sbr.rel (%p210) target = $region16
        $region15: #{tpu_custom_call.1} parent=11 // pred_region
          _
        $region16: #{tpu_custom_call.1} parent=11 // pred_fallthru
          _
        // Predicated region
        $region17: #{tpu_custom_call.1} parent=11 // pred_check
          %p213 = pneg %p85
        $region18: #{tpu_custom_call.1} parent=11 // pred_check_branch
          %215 = sbr.rel (%p213) target = $region20
        $region19: #{tpu_custom_call.1} parent=11 // pred_region
          _
        $region20: #{tpu_custom_call.1} parent=11 // pred_fallthru
          _
        // Predicated region
        $region21: #{tpu_custom_call.1} parent=11 // pred_check
          %p216 = pneg %p106
        $region22: #{tpu_custom_call.1} parent=11 // pred_check_branch
          %218 = sbr.rel (%p216) target = $region24
        $region23: #{tpu_custom_call.1} parent=11 // pred_region
          %s220 = ssub.s32 6144, 6144
          %221 = vsyncadd [#allocation3], %s220
          %s222 = sshll.u32 [#allocation2], 4
          %s223 = int_to_ptr.vmem [resolvable:$true] %s222
          %228 = dma.hbm_to_vmem [thread:$0]  %s3, 6144, %s223, [#allocation3], 128, 128, 8
        $region24: #{tpu_custom_call.1} parent=11 // pred_fallthru
          _
        // Predicated region
        $region25: #{tpu_custom_call.1} parent=11 // pred_check
          %p229 = pneg %p127
        $region26: #{tpu_custom_call.1} parent=11 // pred_check_branch
          %231 = sbr.rel (%p229) target = $region28
        $region27: #{tpu_custom_call.1} parent=11 // pred_region
          _
        $region28: #{tpu_custom_call.1} parent=11 // pred_fallthru
          _
        // Predicated region
        $region29: #{tpu_custom_call.1} parent=11 // pred_check
          %p232 = pneg %p148
        $region30: #{tpu_custom_call.1} parent=11 // pred_check_branch
          %234 = sbr.rel (%p232) target = $region32
        $region31: #{tpu_custom_call.1} parent=11 // pred_region
          _
        $region32: #{tpu_custom_call.1} parent=11 // pred_fallthru
          _
        // Predicated region
        $region33: #{tpu_custom_call.1} parent=11 // pred_check
          %p235 = pneg %p169
        $region34: #{tpu_custom_call.1} parent=11 // pred_check_branch
          %237 = sbr.rel (%p235) target = $region36
        $region35: #{tpu_custom_call.1} parent=11 // pred_region
          _
        $region36: #{tpu_custom_call.1} parent=11 // pred_fallthru
          _
      $region12: #{tpu_custom_call.1} parent=5 // pred_fallthru
        _
      %p238 = scmp.lt.s32.totalorder %s17, 2
      // Predicated region
      $region37: #{tpu_custom_call.1} parent=5 // pred_check
        %p239 = pneg %p238
      $region38: #{tpu_custom_call.1} parent=5 // pred_check_branch
        %241 = sbr.rel (%p239) target = $region40
      $region39: #{tpu_custom_call.1} parent=5 // pred_region
        // Predicated region
        $region41: #{tpu_custom_call.1} parent=39 // pred_check
          %p242 = pneg %p37
        $region42: #{tpu_custom_call.1} parent=39 // pred_check_branch
          %244 = sbr.rel (%p242) target = $region44
        $region43: #{tpu_custom_call.1} parent=39 // pred_region
          %s245 = smul.u32 4, %s17
          %p246 = scmp.lt.s32.totalorder %s245, 7
          %s247 = scalar_select %p246, %s245, 7
          %s248 = smul.addr %s247, 2
          %s249 = smul.addr %s248, 8
          %s250 = scalar_lea.vmem %s0, %s249
          %s251 = smul.u32 4, %s17
        $region44: #{tpu_custom_call.1} parent=39 // pred_fallthru
          _
      $region40: #{tpu_custom_call.1} parent=5 // pred_fallthru
        _
      %p252 = scmp.le.s32.totalorder 1, %s17
      %p253 = scmp.lt.s32.totalorder %s17, 3
      %p254 = pnand %p252, %p253
      %p255 = pneg %p254
      // Predicated region
      $region45: #{tpu_custom_call.1} parent=5 // pred_check
        _
      $region46: #{tpu_custom_call.1} parent=5 // pred_check_branch
        %257 = sbr.rel (%p254) target = $region48
      $region47: #{tpu_custom_call.1} parent=5 // pred_region
        %s258 = ssub.s32 %s17, 1
        // Predicated region
        $region49: #{tpu_custom_call.1} parent=47 // pred_check
          %p259 = pneg %p106
        $region50: #{tpu_custom_call.1} parent=47 // pred_check_branch
          %261 = sbr.rel (%p259) target = $region52
        $region51: #{tpu_custom_call.1} parent=47 // pred_region
          %262 = dma.done [#allocation3], 6144
        $region52: #{tpu_custom_call.1} parent=47 // pred_fallthru
          _
        %s263 = smul.u32 4, %s22
        %p264 = scmp.lt.s32.totalorder %s263, 7
        %s265 = scalar_select %p264, %s263, 7
        %s266 = smul.addr %s265, 2
        %s267 = smul.addr %s266, 8
        %s268 = scalar_lea.vmem %s0, %s267
        %p269 = pneg %p43
        %p270 = pneg %p40
        %p271 = pneg %p64
        %p272 = pneg %p61
        %p273 = pneg %p85
        %p274 = pneg %p82
        %p275 = pneg %p106
        %p276 = pneg %p103
        %p277 = pneg %p127
        %p278 = pneg %p124
        %p279 = pneg %p148
        %p280 = pneg %p145
        %p281 = pneg %p169
        %p282 = pneg %p166
        %p283 = pneg %p195
        %p284 = pneg %p192
        %s285 = sand.u32 %s182, 1
        %s286 = scalar_lea.sflag [#allocation4], %s285
        %s287 = sand.u32 %s182, 1
        %s288 = smul.addr %s287, 64
        %s289 = scalar_lea.vmem [#allocation5], %s288
        %s290 = smul.u32 4, %s22
        %p291 = scmp.lt.s32.totalorder %s290, 7
        %s292 = scalar_select %p291, %s290, 7
        %s293 = smul.addr %s292, 2
        %s294 = smul.addr %s293, 8
        %s295 = scalar_lea.vmem %s0, %s294
        %s296 = smul.u32 4, %s22
        %s297 = smul.u32 4, %s22
        %v298 = vld [vmem:[%s295] sm:$0xff]
        %v299 = vld [vmem:[%s295 + $0x8] sm:$0xff]
        %v300 = vld [vmem:[%s295 + $0x10] sm:$0xff]
        %v301 = vld [vmem:[%s295 + $0x18] sm:$0xff]
        %v302 = vld [vmem:[%s295 + $0x20] sm:$0xff]
        %v303 = vld [vmem:[%s295 + $0x28] sm:$0xff]
        %v304 = vld [vmem:[%s295 + $0x30] sm:$0xff]
        %v305 = vld [vmem:[%s295 + $0x38] sm:$0xff]
        %vm314 = vcmask 1043456
        %v315 = vrot.slane %v298, 4
        %v316 = vrot.slane %v299, 4
        %v317 = vsel %vm314, %v315, %v316
        %v318 = vrot.slane %v300, 4
        %v319 = vrot.slane %v301, 4
        %v320 = vsel %vm314, %v318, %v319
        %v321 = vrot.slane %v302, 4
        %v322 = vrot.slane %v303, 4
        %v323 = vsel %vm314, %v321, %v322
        %v324 = vrot.slane %v304, 4
        %v325 = vrot.slane %v305, 4
        %v326 = vsel %vm314, %v324, %v325
        %v335 = vsel %vm314, 0.0, %v315
        %v336 = vsel %vm314, 0.0, %v318
        %v337 = vsel %vm314, 0.0, %v321
        %v338 = vsel %vm314, 0.0, %v324
        %vm343 = vcmask 1045504
        %v344 = vrot.slane %v335, 2
        %v345 = vrot.slane %v317, 2
        %v346 = vsel %vm343, %v344, %v345
        %v347 = vrot.slane %v316, 2
        %v348 = vsel %vm343, %v345, %v347
        %v349 = vrot.slane %v336, 2
        %v350 = vrot.slane %v320, 2
        %v351 = vsel %vm343, %v349, %v350
        %v352 = vrot.slane %v319, 2
        %v353 = vsel %vm343, %v350, %v352
        %v354 = vrot.slane %v337, 2
        %v355 = vrot.slane %v323, 2
        %v356 = vsel %vm343, %v354, %v355
        %v357 = vrot.slane %v322, 2
        %v358 = vsel %vm343, %v355, %v357
        %v359 = vrot.slane %v338, 2
        %v360 = vrot.slane %v326, 2
        %v361 = vsel %vm343, %v359, %v360
        %v362 = vrot.slane %v325, 2
        %v363 = vsel %vm343, %v360, %v362
        %364 = vrot.lane.b32.xlu0 %v346, 4
        %v365 = vpop.permute.xlu0 %364
        %366 = vrot.lane.b32.xlu0 %v348, 4
        %v367 = vpop.permute.xlu0 %366
        %368 = vrot.lane.b32.xlu0 %v351, 4
        %v369 = vpop.permute.xlu0 %368
        %370 = vrot.lane.b32.xlu0 %v353, 4
        %v371 = vpop.permute.xlu0 %370
        %372 = vrot.lane.b32.xlu0 %v356, 4
        %v373 = vpop.permute.xlu0 %372
        %374 = vrot.lane.b32.xlu0 %v358, 4
        %v375 = vpop.permute.xlu0 %374
        %376 = vrot.lane.b32.xlu0 %v361, 4
        %v377 = vpop.permute.xlu0 %376
        %378 = vrot.lane.b32.xlu0 %v363, 4
        %v379 = vpop.permute.xlu0 %378
        %v388 = vrot.slane %v335, 4
        %v389 = vrot.slane %v317, 4
        %v390 = vsel %vm314, %v388, %v389
        %v391 = vrot.slane %v316, 4
        %v392 = vsel %vm314, %v389, %v391
        %v393 = vrot.slane %v336, 4
        %v394 = vrot.slane %v320, 4
        %v395 = vsel %vm314, %v393, %v394
        %v396 = vrot.slane %v319, 4
        %v397 = vsel %vm314, %v394, %v396
        %v398 = vrot.slane %v337, 4
        %v399 = vrot.slane %v323, 4
        %v400 = vsel %vm314, %v398, %v399
        %v401 = vrot.slane %v322, 4
        %v402 = vsel %vm314, %v399, %v401
        %v403 = vrot.slane %v338, 4
        %v404 = vrot.slane %v326, 4
        %v405 = vsel %vm314, %v403, %v404
        %v406 = vrot.slane %v325, 4
        %v407 = vsel %vm314, %v404, %v406
        %408 = vrot.lane.b32.xlu0 %v390, 8
        %v409 = vpop.permute.xlu0 %408
        %410 = vrot.lane.b32.xlu0 %v392, 8
        %v411 = vpop.permute.xlu0 %410
        %412 = vrot.lane.b32.xlu0 %v395, 8
        %v413 = vpop.permute.xlu0 %412
        %414 = vrot.lane.b32.xlu0 %v397, 8
        %v415 = vpop.permute.xlu0 %414
        %416 = vrot.lane.b32.xlu0 %v400, 8
        %v417 = vpop.permute.xlu0 %416
        %418 = vrot.lane.b32.xlu0 %v402, 8
        %v419 = vpop.permute.xlu0 %418
        %420 = vrot.lane.b32.xlu0 %v405, 8
        %v421 = vpop.permute.xlu0 %420
        %422 = vrot.lane.b32.xlu0 %v407, 8
        %v423 = vpop.permute.xlu0 %422
        %vm432 = vcmask 31744
        %v433 = vsel %vm432, %v335, %v365
        %v434 = vsel %vm432, %v317, %v367
        %v435 = vsel %vm432, %v336, %v369
        %v436 = vsel %vm432, %v320, %v371
        %v437 = vsel %vm432, %v337, %v373
        %v438 = vsel %vm432, %v323, %v375
        %v439 = vsel %vm432, %v338, %v377
        %v440 = vsel %vm432, %v326, %v379
        %vm441 = vcmask 64512
        %v442 = vsel %vm441, %v433, %v409
        %v443 = vsel %vm441, %v434, %v411
        %v444 = vsel %vm441, %v435, %v413
        %v445 = vsel %vm441, %v436, %v415
        %v446 = vsel %vm441, %v437, %v417
        %v447 = vsel %vm441, %v438, %v419
        %v448 = vsel %vm441, %v439, %v421
        %v449 = vsel %vm441, %v440, %v423
        %v450 = vld [vmem:[%s1] sm:$0xff]
        %v451 = vld [vmem:[%s1 + $0x8] sm:$0xf]
        %v452 = vld [vmem:[%s2] sm:$0x1]
        %v454 = vlaneseq
        %v455 = vshrl.u32 %v454, 7
        %v456 = vsub.s32 0, %v455
        %v457 = vrot.slane %v452, %v456
        %vm459 = vcmask 97280
        %v461 = vsel %vm459, %v442, 0
        %v464 = vsel %vm459, %v443, 0
        %v467 = vsel %vm459, %v444, 0
        %v470 = vsel %vm459, %v445, 0
        %v473 = vsel %vm459, %v446, 0
        %v476 = vsel %vm459, %v447, 0
        %v479 = vsel %vm459, %v448, 0
        %v482 = vsel %vm459, %v449, 0
        %v485 = vsel %vm314, %v451, 0
        %487 = vmatprep.subr.mxu0 0.0
        %488 = vmatpush1.msra.mxu0 %v450
        %489 = vmatprep.subr.mxu0 0.0
        %490 = vmatpush1.msra.mxu0 %v485
        %491 = vmatprep.subr.mxu0 0.0
        %492 = vmatpush1.msra.mxu0 0.0
        %493 = vmatprep.subr.mxu0 0.0
        %494 = vmatpush1.msra.mxu0 0.0
        %495 = vmatprep.subr.mxu0 0.0
        %496 = vmatpush1.msra.mxu0 0.0
        %497 = vmatprep.subr.mxu0 0.0
        %498 = vmatpush1.msra.mxu0 0.0
        %499 = vmatprep.subr.mxu0 0.0
        %500 = vmatpush1.msra.mxu0 0.0
        %501 = vmatprep.subr.mxu0 0.0
        %502 = vmatpush1.msra.mxu0 0.0
        %503 = vmatprep.subr.mxu0 0.0
        %504 = vmatpush1.msra.mxu0 0.0
        %505 = vmatprep.subr.mxu0 0.0
        %506 = vmatpush1.msra.mxu0 0.0
        %507 = vmatprep.subr.mxu0 0.0
        %508 = vmatpush1.msra.mxu0 0.0
        %509 = vmatprep.subr.mxu0 0.0
        %510 = vmatpush1.msra.mxu0 0.0
        %511 = vmatprep.subr.mxu0 0.0
        %512 = vmatpush1.msra.mxu0 0.0
        %513 = vmatprep.subr.mxu0 0.0
        %514 = vmatpush1.msra.mxu0 0.0
        %515 = vmatprep.subr.mxu0 0.0
        %516 = vmatpush1.msra.mxu0 0.0
        %517 = vmatprep.subr.mxu0 0.0
        %518 = vmatpush1.msra.mxu0 0.0
        %519 = vmatprep.subr.mxu0 0.0
        %520 = vmatpush1.msra.mxu0 0.0
        %521 = vmatprep.subr.mxu0 0.0
        %522 = vmatpush1.msra.mxu0 0.0
        %523 = vmatprep.subr.mxu0 0.0
        %524 = vmatpush1.msra.mxu0 0.0
        %525 = vmatprep.subr.mxu0 0.0
        %526 = vmatpush1.msra.mxu0 0.0
        %527 = vmatprep.subr.mxu0 0.0
        %528 = vmatpush1.msra.mxu0 0.0
        %529 = vmatprep.subr.mxu0 0.0
        %530 = vmatpush1.msra.mxu0 0.0
        %531 = vmatprep.subr.mxu0 0.0
        %532 = vmatpush1.msra.mxu0 0.0
        %533 = vmatprep.subr.mxu0 0.0
        %534 = vmatpush1.msra.mxu0 0.0
        %535 = vmatprep.subr.mxu0 0.0
        %536 = vmatpush1.msra.mxu0 0.0
        %537 = vmatprep.subr.mxu0 0.0
        %538 = vmatpush1.msra.mxu0 0.0
        %539 = vmatprep.subr.mxu0 0.0
        %540 = vmatpush1.msra.mxu0 0.0
        %541 = vmatprep.subr.mxu0 0.0
        %542 = vmatpush1.msra.mxu0 0.0
        %543 = vmatprep.subr.mxu0 0.0
        %544 = vmatpush1.msra.mxu0 0.0
        %545 = vmatprep.subr.mxu0 0.0
        %546 = vmatpush1.msra.mxu0 0.0
        %547 = vmatprep.subr.mxu0 0.0
        %548 = vmatpush1.msra.mxu0 0.0
        %549 = vmatprep.subr.mxu0 0.0
        %550 = vmatpush1.msra.mxu0 0.0
        %551 = vmatprep.mubr.f32.mxu0 0.0
        %552 = vmatmul.mubr.f32.gmra.mrb[0].mxu0 %v461
        %v553 = vpop.f32.mrb[0].mxu0
        %v554 = vadd.f32 %v457, %v553
        %v555 = vpop.f32.mrb[0].mxu0
        %556 = vmatprep.mubr.f32.mxu0 0.0
        %557 = vmatmul.mubr.f32.gmra.mrb[0].mxu0 %v464
        %v558 = vpop.f32.mrb[0].mxu0
        %v559 = vadd.f32 %v457, %v558
        %v560 = vpop.f32.mrb[0].mxu0
        %561 = vmatprep.mubr.f32.mxu0 0.0
        %562 = vmatmul.mubr.f32.gmra.mrb[0].mxu0 %v467
        %v563 = vpop.f32.mrb[0].mxu0
        %v564 = vadd.f32 %v457, %v563
        %v565 = vpop.f32.mrb[0].mxu0
        %566 = vmatprep.mubr.f32.mxu0 0.0
        %567 = vmatmul.mubr.f32.gmra.mrb[0].mxu0 %v470
        %v568 = vpop.f32.mrb[0].mxu0
        %v569 = vadd.f32 %v457, %v568
        %v570 = vpop.f32.mrb[0].mxu0
        %571 = vmatprep.mubr.f32.mxu0 0.0
        %572 = vmatmul.mubr.f32.gmra.mrb[0].mxu0 %v473
        %v573 = vpop.f32.mrb[0].mxu0
        %v574 = vadd.f32 %v457, %v573
        %v575 = vpop.f32.mrb[0].mxu0
        %576 = vmatprep.mubr.f32.mxu0 0.0
        %577 = vmatmul.mubr.f32.gmra.mrb[0].mxu0 %v476
        %v578 = vpop.f32.mrb[0].mxu0
        %v579 = vadd.f32 %v457, %v578
        %v580 = vpop.f32.mrb[0].mxu0
        %581 = vmatprep.mubr.f32.mxu0 0.0
        %582 = vmatmul.mubr.f32.gmra.mrb[0].mxu0 %v479
        %v583 = vpop.f32.mrb[0].mxu0
        %v584 = vadd.f32 %v457, %v583
        %v585 = vpop.f32.mrb[0].mxu0
        %586 = vmatprep.mubr.f32.mxu0 0.0
        %587 = vmatmul.mubr.f32.gmra.mrb[0].mxu0 %v482
        %v588 = vpop.f32.mrb[0].mxu0
        %v589 = vadd.f32 %v457, %v588
        %v590 = vpop.f32.mrb[0].mxu0
        %591 = vdwg.mxu0
        %v592 = vmax.f32 %v554, 0.0
        %v593 = vmax.f32 %v559, 0.0
        %v594 = vmax.f32 %v564, 0.0
        %v595 = vmax.f32 %v569, 0.0
        %v596 = vmax.f32 %v574, 0.0
        %v597 = vmax.f32 %v579, 0.0
        %v598 = vmax.f32 %v584, 0.0
        %v599 = vmax.f32 %v589, 0.0
        %v608 = vrot.slane %v592, 4
        %v609 = vrot.slane %v593, 4
        %v610 = vsel %vm314, %v608, %v609
        %v611 = vrot.slane %v594, 4
        %v612 = vrot.slane %v595, 4
        %v613 = vsel %vm314, %v611, %v612
        %v614 = vrot.slane %v596, 4
        %v615 = vrot.slane %v597, 4
        %v616 = vsel %vm314, %v614, %v615
        %v617 = vrot.slane %v598, 4
        %v618 = vrot.slane %v599, 4
        %v619 = vsel %vm314, %v617, %v618
        %v628 = vsel %vm314, 0.0, %v608
        %v629 = vsel %vm314, 0.0, %v611
        %v630 = vsel %vm314, 0.0, %v614
        %v631 = vsel %vm314, 0.0, %v617
        %v636 = vrot.slane %v628, 2
        %v637 = vrot.slane %v610, 2
        %v638 = vsel %vm343, %v636, %v637
        %v639 = vrot.slane %v609, 2
        %v640 = vsel %vm343, %v637, %v639
        %v641 = vrot.slane %v629, 2
        %v642 = vrot.slane %v613, 2
        %v643 = vsel %vm343, %v641, %v642
        %v644 = vrot.slane %v612, 2
        %v645 = vsel %vm343, %v642, %v644
        %v646 = vrot.slane %v630, 2
        %v647 = vrot.slane %v616, 2
        %v648 = vsel %vm343, %v646, %v647
        %v649 = vrot.slane %v615, 2
        %v650 = vsel %vm343, %v647, %v649
        %v651 = vrot.slane %v631, 2
        %v652 = vrot.slane %v619, 2
        %v653 = vsel %vm343, %v651, %v652
        %v654 = vrot.slane %v618, 2
        %v655 = vsel %vm343, %v652, %v654
        %v664 = vrot.slane %v628, 4
        %v665 = vrot.slane %v610, 4
        %v666 = vsel %vm314, %v664, %v665
        %v667 = vrot.slane %v609, 4
        %v668 = vsel %vm314, %v665, %v667
        %v669 = vrot.slane %v629, 4
        %v670 = vrot.slane %v613, 4
        %v671 = vsel %vm314, %v669, %v670
        %v672 = vrot.slane %v612, 4
        %v673 = vsel %vm314, %v670, %v672
        %v674 = vrot.slane %v630, 4
        %v675 = vrot.slane %v616, 4
        %v676 = vsel %vm314, %v674, %v675
        %v677 = vrot.slane %v615, 4
        %v678 = vsel %vm314, %v675, %v677
        %v679 = vrot.slane %v631, 4
        %v680 = vrot.slane %v619, 4
        %v681 = vsel %vm314, %v679, %v680
        %v682 = vrot.slane %v618, 4
        %v683 = vsel %vm314, %v680, %v682
        %v692 = vld [vmem:[#allocation2] sm:$0xff]
        %v693 = vld [vmem:[#allocation2 + $0x8] sm:$0xff]
        %v694 = vld [vmem:[#allocation2 + $0x10] sm:$0xff]
        %v695 = vld [vmem:[#allocation2 + $0x18] sm:$0xff]
        %v696 = vld [vmem:[#allocation2 + $0x20] sm:$0xff]
        %v697 = vld [vmem:[#allocation2 + $0x28] sm:$0xff]
        %v698 = vld [vmem:[#allocation2 + $0x30] sm:$0xff]
        %v699 = vld [vmem:[#allocation2 + $0x38] sm:$0xff]
        %v700 = vld [vmem:[#allocation2 + $0x40] sm:$0xff]
        %v701 = vld [vmem:[#allocation2 + $0x48] sm:$0xff]
        %v702 = vld [vmem:[#allocation2 + $0x50] sm:$0xff]
        %v703 = vld [vmem:[#allocation2 + $0x58] sm:$0xff]
        %v704 = vld [vmem:[#allocation2 + $0x60] sm:$0xff]
        %v705 = vld [vmem:[#allocation2 + $0x68] sm:$0xff]
        %v706 = vld [vmem:[#allocation2 + $0x70] sm:$0xff]
        %v707 = vld [vmem:[#allocation2 + $0x78] sm:$0xff]
        %v708 = vld [vmem:[#allocation2 + $0x80] sm:$0xff]
        %v709 = vld [vmem:[#allocation2 + $0x88] sm:$0xff]
        %v710 = vld [vmem:[#allocation2 + $0x90] sm:$0xff]
        %v711 = vld [vmem:[#allocation2 + $0x98] sm:$0xff]
        %v712 = vld [vmem:[#allocation2 + $0xa0] sm:$0xff]
        %v713 = vld [vmem:[#allocation2 + $0xa8] sm:$0xff]
        %v714 = vld [vmem:[#allocation2 + $0xb0] sm:$0xff]
        %v715 = vld [vmem:[#allocation2 + $0xb8] sm:$0xff]
        %v716 = vld [vmem:[#allocation2 + $0xc0] sm:$0xff]
        %v717 = vld [vmem:[#allocation2 + $0xc8] sm:$0xff]
        %v718 = vld [vmem:[#allocation2 + $0xd0] sm:$0xff]
        %v719 = vld [vmem:[#allocation2 + $0xd8] sm:$0xff]
        %v720 = vld [vmem:[#allocation2 + $0xe0] sm:$0xff]
        %v721 = vld [vmem:[#allocation2 + $0xe8] sm:$0xff]
        %v722 = vld [vmem:[#allocation2 + $0xf0] sm:$0xff]
        %v723 = vld [vmem:[#allocation2 + $0xf8] sm:$0xff]
        %v724 = vld [vmem:[#allocation2 + $0x100] sm:$0xff]
        %v725 = vld [vmem:[#allocation2 + $0x108] sm:$0xff]
        %v726 = vld [vmem:[#allocation2 + $0x110] sm:$0xff]
        %v727 = vld [vmem:[#allocation2 + $0x118] sm:$0xff]
        %v728 = vld [vmem:[#allocation2 + $0x120] sm:$0xff]
        %v729 = vld [vmem:[#allocation2 + $0x128] sm:$0xff]
        %v730 = vld [vmem:[#allocation2 + $0x130] sm:$0xff]
        %v731 = vld [vmem:[#allocation2 + $0x138] sm:$0xff]
        %v732 = vld [vmem:[#allocation2 + $0x140] sm:$0xff]
        %v733 = vld [vmem:[#allocation2 + $0x148] sm:$0xff]
        %v734 = vld [vmem:[#allocation2 + $0x150] sm:$0xff]
        %v735 = vld [vmem:[#allocation2 + $0x158] sm:$0xff]
        %v736 = vld [vmem:[#allocation2 + $0x160] sm:$0xff]
        %v737 = vld [vmem:[#allocation2 + $0x168] sm:$0xff]
        %v738 = vld [vmem:[#allocation2 + $0x170] sm:$0xff]
        %v739 = vld [vmem:[#allocation2 + $0x178] sm:$0xff]
        %v740 = vld [vmem:[%s4] sm:$0x1]
        %v742 = vlaneseq
        %v743 = vshrl.u32 %v742, 7
        %v744 = vsub.s32 0, %v743
        %v745 = vrot.slane %v740, %v744
        %747 = vmatprep.subr.mxu0 0.0
        %748 = vmatpush1.msra.mxu0 %v692
        %749 = vmatprep.subr.mxu0 0.0
        %750 = vmatpush1.msra.mxu0 %v693
        %751 = vmatprep.subr.mxu0 0.0
        %752 = vmatpush1.msra.mxu0 %v694
        %753 = vmatprep.subr.mxu0 0.0
        %754 = vmatpush1.msra.mxu0 %v695
        %755 = vmatprep.subr.mxu0 0.0
        %756 = vmatpush1.msra.mxu0 %v696
        %757 = vmatprep.subr.mxu0 0.0
        %758 = vmatpush1.msra.mxu0 %v697
        %759 = vmatprep.subr.mxu0 0.0
        %760 = vmatpush1.msra.mxu0 %v698
        %761 = vmatprep.subr.mxu0 0.0
        %762 = vmatpush1.msra.mxu0 %v699
        %763 = vmatprep.subr.mxu0 0.0
        %764 = vmatpush1.msra.mxu0 %v700
        %765 = vmatprep.subr.mxu0 0.0
        %766 = vmatpush1.msra.mxu0 %v701
        %767 = vmatprep.subr.mxu0 0.0
        %768 = vmatpush1.msra.mxu0 %v702
        %769 = vmatprep.subr.mxu0 0.0
        %770 = vmatpush1.msra.mxu0 %v703
        %771 = vmatprep.subr.mxu0 0.0
        %772 = vmatpush1.msra.mxu0 %v704
        %773 = vmatprep.subr.mxu0 0.0
        %774 = vmatpush1.msra.mxu0 %v705
        %775 = vmatprep.subr.mxu0 0.0
        %776 = vmatpush1.msra.mxu0 %v706
        %777 = vmatprep.subr.mxu0 0.0
        %778 = vmatpush1.msra.mxu0 %v707
        %779 = vmatprep.subr.mxu0 0.0
        %780 = vmatpush1.msra.mxu0 %v708
        %781 = vmatprep.subr.mxu0 0.0
        %782 = vmatpush1.msra.mxu0 %v709
        %783 = vmatprep.subr.mxu0 0.0
        %784 = vmatpush1.msra.mxu0 %v710
        %785 = vmatprep.subr.mxu0 0.0
        %786 = vmatpush1.msra.mxu0 %v711
        %787 = vmatprep.subr.mxu0 0.0
        %788 = vmatpush1.msra.mxu0 %v712
        %789 = vmatprep.subr.mxu0 0.0
        %790 = vmatpush1.msra.mxu0 %v713
        %791 = vmatprep.subr.mxu0 0.0
        %792 = vmatpush1.msra.mxu0 %v714
        %793 = vmatprep.subr.mxu0 0.0
        %794 = vmatpush1.msra.mxu0 %v715
        %795 = vmatprep.subr.mxu0 0.0
        %796 = vmatpush1.msra.mxu0 %v716
        %797 = vmatprep.subr.mxu0 0.0
        %798 = vmatpush1.msra.mxu0 %v717
        %799 = vmatprep.subr.mxu0 0.0
        %800 = vmatpush1.msra.mxu0 %v718
        %801 = vmatprep.subr.mxu0 0.0
        %802 = vmatpush1.msra.mxu0 %v719
        %803 = vmatprep.subr.mxu0 0.0
        %804 = vmatpush1.msra.mxu0 %v720
        %805 = vmatprep.subr.mxu0 0.0
        %806 = vmatpush1.msra.mxu0 %v721
        %807 = vmatprep.subr.mxu0 0.0
        %808 = vmatpush1.msra.mxu0 %v722
        %809 = vmatprep.subr.mxu0 0.0
        %810 = vmatpush1.msra.mxu0 %v723
        %811 = vmatprep.mubr.f32.mxu0 %v638
        %812 = vmatmul.mubr.f32.gmra.mrb[0].mxu0 %v628
        %v813 = vpop.f32.mrb[0].mxu0
        %v814 = vadd.f32 %v745, %v813
        %v815 = vpop.f32.mrb[0].mxu0
        %816 = vmatprep.mubr.f32.mxu0 %v640
        %817 = vmatmul.mubr.f32.gmra.mrb[0].mxu0 %v610
        %v818 = vpop.f32.mrb[0].mxu0
        %v819 = vadd.f32 %v745, %v818
        %v820 = vpop.f32.mrb[0].mxu0
        %821 = vmatprep.mubr.f32.mxu0 %v643
        %822 = vmatmul.mubr.f32.gmra.mrb[0].mxu0 %v629
        %v823 = vpop.f32.mrb[0].mxu0
        %v824 = vadd.f32 %v745, %v823
        %v825 = vpop.f32.mrb[0].mxu0
        %826 = vmatprep.mubr.f32.mxu0 %v645
        %827 = vmatmul.mubr.f32.gmra.mrb[0].mxu0 %v613
        %v828 = vpop.f32.mrb[0].mxu0
        %v829 = vadd.f32 %v745, %v828
        %v830 = vpop.f32.mrb[0].mxu0
        %831 = vmatprep.mubr.f32.mxu0 %v648
        %832 = vmatmul.mubr.f32.gmra.mrb[0].mxu0 %v630
        %v833 = vpop.f32.mrb[0].mxu0
        %v834 = vadd.f32 %v745, %v833
        %v835 = vpop.f32.mrb[0].mxu0
        %836 = vmatprep.mubr.f32.mxu0 %v650
        %837 = vmatmul.mubr.f32.gmra.mrb[0].mxu0 %v616
        %v838 = vpop.f32.mrb[0].mxu0
        %v839 = vadd.f32 %v745, %v838
        %v840 = vpop.f32.mrb[0].mxu0
        %841 = vmatprep.mubr.f32.mxu0 %v653
        %842 = vmatmul.mubr.f32.gmra.mrb[0].mxu0 %v631
        %v843 = vpop.f32.mrb[0].mxu0
        %v844 = vadd.f32 %v745, %v843
        %v845 = vpop.f32.mrb[0].mxu0
        %846 = vmatprep.mubr.f32.mxu0 %v655
        %847 = vmatmul.mubr.f32.gmra.mrb[0].mxu0 %v619
        %v848 = vpop.f32.mrb[0].mxu0
        %v849 = vadd.f32 %v745, %v848
        %v850 = vpop.f32.mrb[0].mxu0
        %851 = vdwg.mxu0
        %852 = vmatprep.subr.mxu0 0.0
        %853 = vmatpush1.msra.mxu0 %v724
        %854 = vmatprep.subr.mxu0 0.0
        %855 = vmatpush1.msra.mxu0 %v725
        %856 = vmatprep.subr.mxu0 0.0
        %857 = vmatpush1.msra.mxu0 %v726
        %858 = vmatprep.subr.mxu0 0.0
        %859 = vmatpush1.msra.mxu0 %v727
        %860 = vmatprep.subr.mxu0 0.0
        %861 = vmatpush1.msra.mxu0 %v728
        %862 = vmatprep.subr.mxu0 0.0
        %863 = vmatpush1.msra.mxu0 %v729
        %864 = vmatprep.subr.mxu0 0.0
        %865 = vmatpush1.msra.mxu0 %v730
        %866 = vmatprep.subr.mxu0 0.0
        %867 = vmatpush1.msra.mxu0 %v731
        %868 = vmatprep.subr.mxu0 0.0
        %869 = vmatpush1.msra.mxu0 %v732
        %870 = vmatprep.subr.mxu0 0.0
        %871 = vmatpush1.msra.mxu0 %v733
        %872 = vmatprep.subr.mxu0 0.0
        %873 = vmatpush1.msra.mxu0 %v734
        %874 = vmatprep.subr.mxu0 0.0
        %875 = vmatpush1.msra.mxu0 %v735
        %876 = vmatprep.subr.mxu0 0.0
        %877 = vmatpush1.msra.mxu0 %v736
        %878 = vmatprep.subr.mxu0 0.0
        %879 = vmatpush1.msra.mxu0 %v737
        %880 = vmatprep.subr.mxu0 0.0
        %881 = vmatpush1.msra.mxu0 %v738
        %882 = vmatprep.subr.mxu0 0.0
        %883 = vmatpush1.msra.mxu0 %v739
        %884 = vmatprep.subr.mxu0 0.0
        %885 = vmatpush1.msra.mxu0 0.0
        %886 = vmatprep.subr.mxu0 0.0
        %887 = vmatpush1.msra.mxu0 0.0
        %888 = vmatprep.subr.mxu0 0.0
        %889 = vmatpush1.msra.mxu0 0.0
        %890 = vmatprep.subr.mxu0 0.0
        %891 = vmatpush1.msra.mxu0 0.0
        %892 = vmatprep.subr.mxu0 0.0
        %893 = vmatpush1.msra.mxu0 0.0
        %894 = vmatprep.subr.mxu0 0.0
        %895 = vmatpush1.msra.mxu0 0.0
        %896 = vmatprep.subr.mxu0 0.0
        %897 = vmatpush1.msra.mxu0 0.0
        %898 = vmatprep.subr.mxu0 0.0
        %899 = vmatpush1.msra.mxu0 0.0
        %900 = vmatprep.subr.mxu0 0.0
        %901 = vmatpush1.msra.mxu0 0.0
        %902 = vmatprep.subr.mxu0 0.0
        %903 = vmatpush1.msra.mxu0 0.0
        %904 = vmatprep.subr.mxu0 0.0
        %905 = vmatpush1.msra.mxu0 0.0
        %906 = vmatprep.subr.mxu0 0.0
        %907 = vmatpush1.msra.mxu0 0.0
        %908 = vmatprep.subr.mxu0 0.0
        %909 = vmatpush1.msra.mxu0 0.0
        %910 = vmatprep.subr.mxu0 0.0
        %911 = vmatpush1.msra.mxu0 0.0
        %912 = vmatprep.subr.mxu0 0.0
        %913 = vmatpush1.msra.mxu0 0.0
        %914 = vmatprep.subr.mxu0 0.0
        %915 = vmatpush1.msra.mxu0 0.0
        %916 = vmatprep.mubr.f32.mxu0 0.0
        %917 = vmatmul.mubr.f32.gmra.mrb[0].mxu0 %v666
        %v918 = vpop.f32.mrb[0].mxu0
        %v919 = vadd.f32 %v814, %v918
        %v920 = vpop.f32.mrb[0].mxu0
        %921 = vmatprep.mubr.f32.mxu0 0.0
        %922 = vmatmul.mubr.f32.gmra.mrb[0].mxu0 %v668
        %v923 = vpop.f32.mrb[0].mxu0
        %v924 = vadd.f32 %v819, %v923
        %v925 = vpop.f32.mrb[0].mxu0
        %926 = vmatprep.mubr.f32.mxu0 0.0
        %927 = vmatmul.mubr.f32.gmra.mrb[0].mxu0 %v671
        %v928 = vpop.f32.mrb[0].mxu0
        %v929 = vadd.f32 %v824, %v928
        %v930 = vpop.f32.mrb[0].mxu0
        %931 = vmatprep.mubr.f32.mxu0 0.0
        %932 = vmatmul.mubr.f32.gmra.mrb[0].mxu0 %v673
        %v933 = vpop.f32.mrb[0].mxu0
        %v934 = vadd.f32 %v829, %v933
        %v935 = vpop.f32.mrb[0].mxu0
        %936 = vmatprep.mubr.f32.mxu0 0.0
        %937 = vmatmul.mubr.f32.gmra.mrb[0].mxu0 %v676
        %v938 = vpop.f32.mrb[0].mxu0
        %v939 = vadd.f32 %v834, %v938
        %v940 = vpop.f32.mrb[0].mxu0
        %941 = vmatprep.mubr.f32.mxu0 0.0
        %942 = vmatmul.mubr.f32.gmra.mrb[0].mxu0 %v678
        %v943 = vpop.f32.mrb[0].mxu0
        %v944 = vadd.f32 %v839, %v943
        %v945 = vpop.f32.mrb[0].mxu0
        %946 = vmatprep.mubr.f32.mxu0 0.0
        %947 = vmatmul.mubr.f32.gmra.mrb[0].mxu0 %v681
        %v948 = vpop.f32.mrb[0].mxu0
        %v949 = vadd.f32 %v844, %v948
        %v950 = vpop.f32.mrb[0].mxu0
        %951 = vmatprep.mubr.f32.mxu0 0.0
        %952 = vmatmul.mubr.f32.gmra.mrb[0].mxu0 %v683
        %v953 = vpop.f32.mrb[0].mxu0
        %v954 = vadd.f32 %v849, %v953
        %v955 = vpop.f32.mrb[0].mxu0
        %956 = vdwg.mxu0
        %v957 = vmax.f32 %v919, 0.0
        %v958 = vmax.f32 %v924, 0.0
        %v959 = vmax.f32 %v929, 0.0
        %v960 = vmax.f32 %v934, 0.0
        %v961 = vmax.f32 %v939, 0.0
        %v962 = vmax.f32 %v944, 0.0
        %v963 = vmax.f32 %v949, 0.0
        %v964 = vmax.f32 %v954, 0.0
        %v965 = vld [vmem:[%s5] sm:$0xf]
        %v966 = vld [vmem:[%s6] sm:$0x1]
        %v968 = vlaneseq
        %v969 = vshrl.u32 %v968, 7
        %v970 = vsub.s32 0, %v969
        %v971 = vrot.slane %v966, %v970
        %v973 = vsel %vm432, %v298, 0
        %v975 = vsel %vm432, %v299, 0
        %v977 = vsel %vm432, %v300, 0
        %v979 = vsel %vm432, %v301, 0
        %v981 = vsel %vm432, %v302, 0
        %v983 = vsel %vm432, %v303, 0
        %v985 = vsel %vm432, %v304, 0
        %v987 = vsel %vm432, %v305, 0
        %v990 = vsel %vm314, %v965, 0
        %992 = vmatprep.subr.mxu0 0.0
        %993 = vmatpush1.msra.mxu0 %v990
        %994 = vmatprep.subr.mxu0 0.0
        %995 = vmatpush1.msra.mxu0 0.0
        %996 = vmatprep.subr.mxu0 0.0
        %997 = vmatpush1.msra.mxu0 0.0
        %998 = vmatprep.subr.mxu0 0.0
        %999 = vmatpush1.msra.mxu0 0.0
        %1000 = vmatprep.subr.mxu0 0.0
        %1001 = vmatpush1.msra.mxu0 0.0
        %1002 = vmatprep.subr.mxu0 0.0
        %1003 = vmatpush1.msra.mxu0 0.0
        %1004 = vmatprep.subr.mxu0 0.0
        %1005 = vmatpush1.msra.mxu0 0.0
        %1006 = vmatprep.subr.mxu0 0.0
        %1007 = vmatpush1.msra.mxu0 0.0
        %1008 = vmatprep.subr.mxu0 0.0
        %1009 = vmatpush1.msra.mxu0 0.0
        %1010 = vmatprep.subr.mxu0 0.0
        %1011 = vmatpush1.msra.mxu0 0.0
        %1012 = vmatprep.subr.mxu0 0.0
        %1013 = vmatpush1.msra.mxu0 0.0
        %1014 = vmatprep.subr.mxu0 0.0
        %1015 = vmatpush1.msra.mxu0 0.0
        %1016 = vmatprep.subr.mxu0 0.0
        %1017 = vmatpush1.msra.mxu0 0.0
        %1018 = vmatprep.subr.mxu0 0.0
        %1019 = vmatpush1.msra.mxu0 0.0
        %1020 = vmatprep.subr.mxu0 0.0
        %1021 = vmatpush1.msra.mxu0 0.0
        %1022 = vmatprep.subr.mxu0 0.0
        %1023 = vmatpush1.msra.mxu0 0.0
        %1024 = vmatprep.subr.mxu0 0.0
        %1025 = vmatpush1.msra.mxu0 0.0
        %1026 = vmatprep.subr.mxu0 0.0
        %1027 = vmatpush1.msra.mxu0 0.0
        %1028 = vmatprep.subr.mxu0 0.0
        %1029 = vmatpush1.msra.mxu0 0.0
        %1030 = vmatprep.subr.mxu0 0.0
        %1031 = vmatpush1.msra.mxu0 0.0
        %1032 = vmatprep.subr.mxu0 0.0
        %1033 = vmatpush1.msra.mxu0 0.0
        %1034 = vmatprep.subr.mxu0 0.0
        %1035 = vmatpush1.msra.mxu0 0.0
        %1036 = vmatprep.subr.mxu0 0.0
        %1037 = vmatpush1.msra.mxu0 0.0
        %1038 = vmatprep.subr.mxu0 0.0
        %1039 = vmatpush1.msra.mxu0 0.0
        %1040 = vmatprep.subr.mxu0 0.0
        %1041 = vmatpush1.msra.mxu0 0.0
        %1042 = vmatprep.subr.mxu0 0.0
        %1043 = vmatpush1.msra.mxu0 0.0
        %1044 = vmatprep.subr.mxu0 0.0
        %1045 = vmatpush1.msra.mxu0 0.0
        %1046 = vmatprep.subr.mxu0 0.0
        %1047 = vmatpush1.msra.mxu0 0.0
        %1048 = vmatprep.subr.mxu0 0.0
        %1049 = vmatpush1.msra.mxu0 0.0
        %1050 = vmatprep.subr.mxu0 0.0
        %1051 = vmatpush1.msra.mxu0 0.0
        %1052 = vmatprep.subr.mxu0 0.0
        %1053 = vmatpush1.msra.mxu0 0.0
        %1054 = vmatprep.subr.mxu0 0.0
        %1055 = vmatpush1.msra.mxu0 0.0
        %1056 = vmatprep.mubr.f32.mxu0 0.0
        %1057 = vmatmul.mubr.f32.gmra.mrb[0].mxu0 %v973
        %v1058 = vpop.f32.mrb[0].mxu0
        %v1059 = vadd.f32 %v971, %v1058
        %v1060 = vpop.f32.mrb[0].mxu0
        %1061 = vmatprep.mubr.f32.mxu0 0.0
        %1062 = vmatmul.mubr.f32.gmra.mrb[0].mxu0 %v975
        %v1063 = vpop.f32.mrb[0].mxu0
        %v1064 = vadd.f32 %v971, %v1063
        %v1065 = vpop.f32.mrb[0].mxu0
        %1066 = vmatprep.mubr.f32.mxu0 0.0
        %1067 = vmatmul.mubr.f32.gmra.mrb[0].mxu0 %v977
        %v1068 = vpop.f32.mrb[0].mxu0
        %v1069 = vadd.f32 %v971, %v1068
        %v1070 = vpop.f32.mrb[0].mxu0
        %1071 = vmatprep.mubr.f32.mxu0 0.0
        %1072 = vmatmul.mubr.f32.gmra.mrb[0].mxu0 %v979
        %v1073 = vpop.f32.mrb[0].mxu0
        %v1074 = vadd.f32 %v971, %v1073
        %v1075 = vpop.f32.mrb[0].mxu0
        %1076 = vmatprep.mubr.f32.mxu0 0.0
        %1077 = vmatmul.mubr.f32.gmra.mrb[0].mxu0 %v981
        %v1078 = vpop.f32.mrb[0].mxu0
        %v1079 = vadd.f32 %v971, %v1078
        %v1080 = vpop.f32.mrb[0].mxu0
        %1081 = vmatprep.mubr.f32.mxu0 0.0
        %1082 = vmatmul.mubr.f32.gmra.mrb[0].mxu0 %v983
        %v1083 = vpop.f32.mrb[0].mxu0
        %v1084 = vadd.f32 %v971, %v1083
        %v1085 = vpop.f32.mrb[0].mxu0
        %1086 = vmatprep.mubr.f32.mxu0 0.0
        %1087 = vmatmul.mubr.f32.gmra.mrb[0].mxu0 %v985
        %v1088 = vpop.f32.mrb[0].mxu0
        %v1089 = vadd.f32 %v971, %v1088
        %v1090 = vpop.f32.mrb[0].mxu0
        %1091 = vmatprep.mubr.f32.mxu0 0.0
        %1092 = vmatmul.mubr.f32.gmra.mrb[0].mxu0 %v987
        %v1093 = vpop.f32.mrb[0].mxu0
        %v1094 = vadd.f32 %v971, %v1093
        %v1095 = vpop.f32.mrb[0].mxu0
        %1096 = vdwg.mxu0
        %v1097 = vadd.f32 %v957, %v1059
        %v1098 = vadd.f32 %v958, %v1064
        %v1099 = vadd.f32 %v959, %v1069
        %v1100 = vadd.f32 %v960, %v1074
        %v1101 = vadd.f32 %v961, %v1079
        %v1102 = vadd.f32 %v962, %v1084
        %v1103 = vadd.f32 %v963, %v1089
        %v1104 = vadd.f32 %v964, %v1094
        %v1105 = vmax.f32 %v1097, 0.0
        %v1106 = vmax.f32 %v1098, 0.0
        %v1107 = vmax.f32 %v1099, 0.0
        %v1108 = vmax.f32 %v1100, 0.0
        %v1109 = vmax.f32 %v1101, 0.0
        %v1110 = vmax.f32 %v1102, 0.0
        %v1111 = vmax.f32 %v1103, 0.0
        %v1112 = vmax.f32 %v1104, 0.0
        %1113 = vst [vmem:[%s289] sm:$0xff] %v1105
        %1114 = vst [vmem:[%s289 + $0x8] sm:$0xff] %v1106
        %1115 = vst [vmem:[%s289 + $0x10] sm:$0xff] %v1107
        %1116 = vst [vmem:[%s289 + $0x18] sm:$0xff] %v1108
        %1117 = vst [vmem:[%s289 + $0x20] sm:$0xff] %v1109
        %1118 = vst [vmem:[%s289 + $0x28] sm:$0xff] %v1110
        %1119 = vst [vmem:[%s289 + $0x30] sm:$0xff] %v1111
        %1120 = vst [vmem:[%s289 + $0x38] sm:$0xff] %v1112
        %s1121 = sand.u32 %s182, 1
        %s1122 = scalar_lea.sflag [#allocation4], %s1121
        %s1123 = sand.u32 %s182, 1
        %s1124 = smul.addr %s1123, 64
        %s1125 = scalar_lea.vmem [#allocation5], %s1124
        // Predicated region
        $region53: #{tpu_custom_call.1} parent=47 // pred_check
          %p1126 = pneg %p192
        $region54: #{tpu_custom_call.1} parent=47 // pred_check_branch
          %1128 = sbr.rel (%p1126) target = $region56
        $region55: #{tpu_custom_call.1} parent=47 // pred_region
          %s1129 = smul.u32 4, %s22
          %s1131 = ssub.s32 1024, 1024
          %1132 = vsyncadd %s1122, %s1131
          %s1133 = smul.addr %s1129, 2
          %s1134 = smul.addr %s1133, 128
          %s1135 = scalar_lea.hbm %s7, %s1134
          %s1136 = sshll.u32 %s1125, 4
          %s1137 = int_to_ptr.vmem [resolvable:$true] %s1136
          %1142 = dma.vmem_to_hbm [thread:$0]  %s1137, 1024, %s1135, %s1122, 128, 128, 8
        $region56: #{tpu_custom_call.1} parent=47 // pred_fallthru
          _
      $region48: #{tpu_custom_call.1} parent=5 // pred_fallthru
        _
      %p1143 = scmp.le.s32.totalorder 2, %s17
      // Predicated region
      $region57: #{tpu_custom_call.1} parent=5 // pred_check
        %p1144 = pneg %p1143
      $region58: #{tpu_custom_call.1} parent=5 // pred_check_branch
        %1146 = sbr.rel (%p1144) target = $region60
      $region59: #{tpu_custom_call.1} parent=5 // pred_region
        %s1147 = ssub.s32 %s17, 2
        // Predicated region
        $region61: #{tpu_custom_call.1} parent=59 // pred_check
          %p1148 = pneg %p198
        $region62: #{tpu_custom_call.1} parent=59 // pred_check_branch
          %1150 = sbr.rel (%p1148) target = $region64
        $region63: #{tpu_custom_call.1} parent=59 // pred_region
          %s1151 = sand.u32 %s183, 1
          %s1152 = scalar_lea.sflag [#allocation4], %s1151
          %s1153 = sand.u32 %s183, 1
          %s1154 = smul.addr %s1153, 64
          %s1155 = scalar_lea.vmem [#allocation5], %s1154
          %1156 = dma.done %s1152, 1024
        $region64: #{tpu_custom_call.1} parent=59 // pred_fallthru
          _
      $region60: #{tpu_custom_call.1} parent=5 // pred_fallthru
        _
    $region6: #{tpu_custom_call.1} parent=1 // loop_footer
      %s21 = sadd.s32 1, %s17
    $region7: #{tpu_custom_call.1} parent=1 // loop_footer_branch
      %16 = sbr.rel target = $region3
    $region8: #{tpu_custom_call.1} parent=1 // loop_exit
      _
    %1157 = vsyncpa [#allocation3], 1
    %s1158 = scalar_lea.sflag [#allocation3], 1
    %1159 = vsyncpa %s1158, 1
    %1160 = vsyncpa [#allocation4], 1
    %s1161 = scalar_lea.sflag [#allocation4], 1
    %1162 = vsyncpa %s1161, 1

</llo_original>
